<compile_context>
chip_gen: v7x
topology: tpu7x:2x2x1
jax: 0.10.0
libtpu: 0.0.40
codegen_flags: <defaults>
</compile_context>

<pallas_src>
import math

import jax
import jax.numpy as jnp
from jax.experimental import pallas as pl
from jax.experimental.pallas import tpu as pltpu


_TILE_BYTES = 3 * 1024 * 1024           # per-buffer tile budget (~3 MiB)
_VMEM_LIMIT_BYTES = 32 * 1024 * 1024    # explicit scoped-VMEM budget (all gens)


def _posenc_kernel(x_ref, base_ref, const_ref, o_ref):
    """Processes one (tile_rows, L) tile of the packed [B, R, L] view.

    base_ref : (tile_rows, 1) f32 — base sequence position of each packed row.
    const_ref: (3, L) f32 rows    — [sub-position within packed row,
                                     inv_freq per lane, odd(=cos)-channel mask].
    """
    sub = const_ref[0:1, :]       # (1, L)
    freq = const_ref[1:2, :]      # (1, L)
    odd = const_ref[2:3, :]       # (1, L)
    # t = base + sub is an exact small integer in f32, so angle matches the
    # reference (position * div_term) bit-for-bit.
    angle = (base_ref[...] + sub) * freq                     # (tile_rows, L)
    pe = jnp.where(odd > 0.5, jnp.cos(angle), jnp.sin(angle))
    o_ref[...] = x_ref[...] + pe.astype(o_ref.dtype)


def _choose_packing(T: int, C: int) -> int:
    """Rows-per-lane-row k so L = k*C is a multiple of 128 (unmasked stores)
    whenever the shape allows it; smallest such k keeps R large for tiling."""
    if C % 128 == 0:
        return 1
    base = 128 // math.gcd(C, 128)
    m = 1
    while True:
        k = base * m
        if k > T or k * C > 4096:
            break
        if T % k == 0:
            return k
        m += 1
    return 1


def _row_align(itemsize: int) -> int:
    if itemsize >= 4:
        return 8
    if itemsize == 2:
        return 16
    return 32


def _choose_tile_rows(R: int, L: int, itemsize: int) -> int:
    """Largest aligned row-tile whose byte size fits the per-buffer budget."""
    row_bytes = max(1, L * itemsize)
    cap = max(1, _TILE_BYTES // row_bytes)
    if R <= cap:
        return R
    align = _row_align(itemsize)
    tr = (cap // align) * align
    return tr if tr > 0 else align


def pos_enc(x: jax.Array) -> jax.Array:
    """Pallas equivalent of PosEnc.forward: x + pe[:, :T] for x of shape [B, T, C]."""
    B, T, C = x.shape
    assert C % 2 == 0, "d_model must be even (same constraint as the PyTorch module)"
    assert T < (1 << 24), "sequence positions must be exactly representable in f32"

    itemsize = jnp.dtype(x.dtype).itemsize

    # Lane-dense view [B, R, L], L = k*C (multiple of 128 when the shape allows).
    k = _choose_packing(T, C)
    R, L = T // k, k * C

    tile_rows = _choose_tile_rows(R, L, itemsize)
    # Keep both v7x TensorCores busy when B == 1 and everything fits one tile.
    if B == 1 and tile_rows >= R:
        align = _row_align(itemsize)
        half = ((R + 1) // 2 + align - 1) // align * align
        if half < R:
            tile_rows = half
    row_tiles = pl.cdiv(R, tile_rows)

    x_packed = x.reshape(B, R, L)

    # Host-side exact integer constants (keeps div/mod out of the kernel).
    lane = jnp.arange(L, dtype=jnp.int32)
    sub = (lane // C).astype(jnp.float32)                    # sub-row inside packed row
    c = lane % C                                             # original channel index
    pair = (c // 2).astype(jnp.float32)
    inv_freq = jnp.exp((2.0 * pair) * (-math.log(10000.0) / float(C)))
    odd = (c % 2).astype(jnp.float32)                        # 1.0 on cos channels
    const_rows = jnp.stack([sub, inv_freq.astype(jnp.float32), odd], axis=0)  # (3, L)

    # Base sequence position of each packed row (co-tiled with x along rows).
    base_col = (jnp.arange(R, dtype=jnp.float32) * float(k)).reshape(R, 1)

    tile_spec = pl.BlockSpec((None, tile_rows, L), lambda i, b: (b, i, 0))
    base_spec = pl.BlockSpec((tile_rows, 1), lambda i, b: (i, 0))
    const_spec = pl.BlockSpec((3, L), lambda i, b: (0, 0))

    out_packed = pl.pallas_call(
        _posenc_kernel,
        out_shape=jax.ShapeDtypeStruct((B, R, L), x.dtype),
        grid=(row_tiles, B),
        in_specs=[tile_spec, base_spec, const_spec],
        out_specs=tile_spec,
        compiler_params=pltpu.CompilerParams(
            # No cross-iteration state -> both axes are safe to shard across
            # TensorCores (key for v7x when row_tiles == 1 but B > 1).
            dimension_semantics=("parallel", "parallel"),
            vmem_limit_bytes=_VMEM_LIMIT_BYTES,
        ),
    )(x_packed, base_col, const_rows)

    return out_packed.reshape(B, T, C)


def pos_enc_ref(x: jax.Array) -> jax.Array:
    """Pure-JAX reference mirroring the PyTorch buffer construction."""
    B, T, C = x.shape
    position = jnp.arange(T, dtype=jnp.float32)[:, None]                    # [T, 1]
    div_term = jnp.exp(jnp.arange(0, C, 2, dtype=jnp.float32)
                       * (-math.log(10000.0) / C))                          # [C/2]
    pe = jnp.zeros((T, C), jnp.float32)
    pe = pe.at[:, 0::2].set(jnp.sin(position * div_term))
    pe = pe.at[:, 1::2].set(jnp.cos(position * div_term))
    return x + pe[None].astype(x.dtype)


if __name__ == "__main__":
    key = jax.random.PRNGKey(0)

    # Primary case: [B, T, C] with a narrow d_model (lane-packing path: C=32 -> L=128).
    B, T, C = 2, 8, 32
    x = jax.random.normal(key, (B, T, C), dtype=jnp.float32)
    out = jax.block_until_ready(pos_enc(x))
    ref = pos_enc_ref(x)
    assert out.shape == (B, T, C)
    assert jnp.allclose(out, ref, atol=1e-5, rtol=1e-5), "mismatch vs reference (C=32)"

    # Already lane-dense channels (k == 1, L multiple of 128).
    B2, T2, C2 = 2, 16, 128
    x2 = jax.random.normal(jax.random.PRNGKey(1), (B2, T2, C2), dtype=jnp.float32)
    out2 = jax.block_until_ready(pos_enc(x2))
    assert jnp.allclose(out2, pos_enc_ref(x2), atol=1e-5, rtol=1e-5), \
        "mismatch vs reference (C=128)"

    # Awkward shape: no 128-multiple packing available (masked-store fallback).
    B3, T3, C3 = 2, 10, 48
    x3 = jax.random.normal(jax.random.PRNGKey(2), (B3, T3, C3), dtype=jnp.float32)
    out3 = jax.block_until_ready(pos_enc(x3))
    assert jnp.allclose(out3, pos_enc_ref(x3), atol=1e-5, rtol=1e-5), \
        "mismatch vs reference (C=48)"

    print("KERNEL_OK")
</pallas_src>

<mosaic_0001>
module attributes {stable_mosaic.version = 11 : i64} {
  func.func @_posenc_kernel(%arg0: i32, %arg1: i32, %arg2: memref<1x2x128xf32, #tpu.memory_space<vmem>>, %arg3: memref<2x1xf32, #tpu.memory_space<vmem>>, %arg4: memref<3x128xf32, #tpu.memory_space<vmem>>, %arg5: memref<1x2x128xf32, #tpu.memory_space<vmem>>) attributes {dimension_semantics = [#tpu.dimension_semantics<parallel>, #tpu.dimension_semantics<parallel>], iteration_bounds = array<i64: 1, 2>, scalar_prefetch = 0 : i64, scratch_operands = 0 : i64, tpu.core_type = #tpu.core_type<tc>, window_params = [{transform_indices = @transform_0, window_bounds = array<i64: 1, 2, 128>}, {transform_indices = @transform_1, window_bounds = array<i64: 2, 1>}, {pipeline_mode = #tpu.pipeline_mode<synchronous>, transform_indices = @transform_2, window_bounds = array<i64: 3, 128>}, {transform_indices = @transform_3, window_bounds = array<i64: 1, 2, 128>}]} {
    %c0 = arith.constant 0 : index
    %c0_0 = arith.constant 0 : index
    %0 = vector.load %arg4[%c0, %c0_0] : memref<3x128xf32, #tpu.memory_space<vmem>>, vector<1x128xf32>
    %c1 = arith.constant 1 : index
    %c0_1 = arith.constant 0 : index
    %1 = vector.load %arg4[%c1, %c0_1] : memref<3x128xf32, #tpu.memory_space<vmem>>, vector<1x128xf32>
    %c2 = arith.constant 2 : index
    %c0_2 = arith.constant 0 : index
    %2 = vector.load %arg4[%c2, %c0_2] : memref<3x128xf32, #tpu.memory_space<vmem>>, vector<1x128xf32>
    %c0_3 = arith.constant 0 : index
    %c0_4 = arith.constant 0 : index
    %3 = vector.load %arg3[%c0_3, %c0_4] : memref<2x1xf32, #tpu.memory_space<vmem>>, vector<2x1xf32>
    %4 = vector.broadcast %3 : vector<2x1xf32> to vector<2x128xf32>
    %5 = vector.broadcast %0 : vector<1x128xf32> to vector<2x128xf32>
    %6 = arith.addf %4, %5 : vector<2x128xf32>
    %7 = vector.broadcast %1 : vector<1x128xf32> to vector<2x128xf32>
    %8 = arith.mulf %6, %7 : vector<2x128xf32>
    %cst = arith.constant 5.000000e-01 : f32
    %9 = vector.broadcast %cst : f32 to vector<1x128xf32>
    %10 = arith.cmpf ogt, %2, %9 : vector<1x128xf32>
    %11 = math.cos %8 : vector<2x128xf32>
    %12 = math.sin %8 : vector<2x128xf32>
    %13 = vector.shape_cast %10 : vector<1x128xi1> to vector<1x128xi1>
    %14 = vector.broadcast %13 : vector<1x128xi1> to vector<2x128xi1>
    %15 = arith.select %14, %11, %12 : vector<2x128xi1>, vector<2x128xf32>
    %c0_5 = arith.constant 0 : index
    %c0_6 = arith.constant 0 : index
    %c0_7 = arith.constant 0 : index
    %16 = vector.load %arg2[%c0_5, %c0_6, %c0_7] : memref<1x2x128xf32, #tpu.memory_space<vmem>>, vector<1x2x128xf32>
    %17 = vector.shape_cast %16 : vector<1x2x128xf32> to vector<2x128xf32>
    %18 = arith.addf %17, %15 : vector<2x128xf32>
    %c0_8 = arith.constant 0 : index
    %c0_9 = arith.constant 0 : index
    %c0_10 = arith.constant 0 : index
    %19 = vector.load %arg5[%c0_8, %c0_9, %c0_10] : memref<1x2x128xf32, #tpu.memory_space<vmem>>, vector<1x2x128xf32>
    %20 = vector.shape_cast %19 : vector<1x2x128xf32> to vector<2x128xf32>
    %21 = vector.shape_cast %18 : vector<2x128xf32> to vector<1x2x128xf32>
    tpu.vector_store %arg5[%c0_8, %c0_9, %c0_10], %21 {strides = array<i32>} : memref<1x2x128xf32, #tpu.memory_space<vmem>>, vector<1x2x128xf32>,
    return
  }
  func.func @transform_0(%arg0: i32, %arg1: i32) -> (i32, i32, i32) {
    %c0_i32 = arith.constant 0 : i32
    %c0_i32_0 = arith.constant 0 : i32
    return %arg1, %arg0, %c0_i32 : i32, i32, i32
  }
  func.func @transform_1(%arg0: i32, %arg1: i32) -> (i32, i32) {
    %c0_i32 = arith.constant 0 : i32
    %c0_i32_0 = arith.constant 0 : i32
    return %arg0, %c0_i32 : i32, i32
  }
  func.func @transform_2(%arg0: i32, %arg1: i32) -> (i32, i32) {
    %c0_i32 = arith.constant 0 : i32
    %c0_i32_0 = arith.constant 0 : i32
    %c0_i32_1 = arith.constant 0 : i32
    return %c0_i32, %c0_i32_0 : i32, i32
  }
  func.func @transform_3(%arg0: i32, %arg1: i32) -> (i32, i32, i32) {
    %c0_i32 = arith.constant 0 : i32
    %c0_i32_0 = arith.constant 0 : i32
    return %arg1, %arg0, %c0_i32 : i32, i32, i32
  }
}

</mosaic_0001>

<llo_original>
// kernel: tpu_custom_call.1
$region0: #{tpu_custom_call.1}
  #allocation0 [shape = 'u32[]', space=smem, size = 0x4, offset = 0x4, fixed_abs, tag = 'smem constant byte address 0x4 - core index']
  #allocation1 [shape = 'u32[144,128]{1,0:T(1,128)}', space=vmem, size = 0x12000, scoped, tag = 'internal scratch']
  %s0 = inlined_call_operand.hbm [shape: f32[2,2,128], index: 0, kind: input, shape index: {}]
  %s1 = inlined_call_operand.vmem [shape: f32[2,1], index: 1, kind: input, shape index: {}]
  %s2 = inlined_call_operand.vmem [shape: f32[3,128], index: 2, kind: input, shape index: {}]
  %s3 = inlined_call_operand.hbm [shape: f32[2,2,128], index: 3, kind: output, shape index: {}]
  %s4 = sld [smem:[#allocation0]]
  $region49: #{tpu_custom_call.1} parent=0
    _
  %s6 = ssub.s32 1, %s4
  %s7 = scalar_select 0, %s6, %s4
  $region1: #{tpu_custom_call.1} parent=0
    #allocation2 [shape = 'u8[2048]{0}', space=vmem, size = 0x800, scoped, tag = 'input window, operand 0']
    #allocation3 [shape = 's32[2]{0}', space=sflag, size = 0x8, scoped, tag = 'scoped memory for tpu_custom_call.1']
    #allocation4 [shape = 's32[2]{0}', space=sflag, size = 0x8, scoped, tag = 'scoped memory for tpu_custom_call.1']
    #allocation5 [shape = 'u8[2048]{0}', space=vmem, size = 0x800, scoped, tag = 'output window, operand 0']
    %8 = vsyncpa [#allocation3], 0
    %s9 = scalar_lea.sflag [#allocation3], 1
    %10 = vsyncpa %s9, 0
    %11 = vsyncpa [#allocation4], 0
    %s12 = scalar_lea.sflag [#allocation4], 1
    %13 = vsyncpa %s12, 0
    loop: start=0, step=1, limit=4
    $region2: #{tpu_custom_call.1} parent=1 // loop_pre_header
      _
    $region3: #{tpu_custom_call.1} parent=1 // loop_header
      %s15 = sphi 0, %s19
      %p16 = scmp.ge.s32.totalorder %s15, 4
      %s22 = sphi 0, %s34
      %s23 = sphi 0, %s30
      %s24 = sphi 0, %s22
      %s25 = sphi 0, %s23
      %s26 = sphi 0, %s24
      %s27 = sphi 0, %s25
      %s39 = sphi 0, %s41
      %s42 = sphi 0, %s39
      %s43 = sphi 0, %s42
      %s59 = sphi 0, %s43
      %s65 = sphi 0, %s67
      %s68 = sphi 0, %s65
      %s69 = sphi 0, %s68
      %s85 = sphi 0, %s69
      %s89 = sphi 0, %s89
      %s91 = sphi 0, %s89
      %s92 = sphi 0, %s91
      %s106 = sphi 0, %s92
      %s114 = sphi 0, %s116
      %s117 = sphi 0, %s114
      %s118 = sphi 0, %s117
      %s134 = sphi 0, %s118
    $region4: #{tpu_custom_call.1} parent=1 // loop_header_branch
      %18 = sbr.rel (%p16) target = $region8
    $region5: #{tpu_custom_call.1} parent=1 // loop_body
      %s20 = ssub.s32 %s15, 1
      %s21 = ssub.s32 %s15, 2
      %s28 = sadd.s32 1, %s23
      %p29 = scmp.ge.s32.totalorder %s28, 2
      %s30 = scalar_select %p29, 0, %s28
      %s31 = sadd.s32 1, %s22
      %s32 = scalar_select %p29, %s31, %s22
      %p33 = scmp.ge.s32.totalorder %s32, 1
      %s34 = scalar_select %p33, 0, %s32
      %s35 = ssub.s32 %s23, %s30
      %s36 = ssub.s32 %s22, %s34
      %s37 = sor.u32 %s35, %s36
      %p38 = scmp.eq.s32.totalorder %s37, 0
      %s40 = sadd.s32 %s39, 1
      %s41 = scalar_select %p38, %s39, %s40
      %p44 = pneg %p38
      %p45 = scmp.eq.s32.totalorder %s15, 1
      %p46 = por %p44, %p45
      %p47 = scmp.ne.s32.totalorder %s39, %s42
      %p48 = scmp.eq.s32.totalorder %s15, 0
      %p49 = por %p47, %p48
      %p50 = scmp.ne.s32.totalorder %s39, %s42
      %p51 = scmp.eq.s32.totalorder %s20, 1
      %p52 = por %p50, %p51
      %p53 = scmp.ne.s32.totalorder %s42, %s43
      %p54 = scmp.eq.s32.totalorder %s20, 0
      %p55 = por %p53, %p54
      %p56 = scmp.ne.s32.totalorder %s42, %s43
      %p57 = scmp.eq.s32.totalorder %s21, 1
      %p58 = por %p56, %p57
      %p60 = scmp.ne.s32.totalorder %s43, %s59
      %p61 = scmp.eq.s32.totalorder %s21, 0
      %p62 = por %p60, %p61
      %s63 = ssub.s32 %s22, %s34
      %p64 = scmp.eq.s32.totalorder %s63, 0
      %s66 = sadd.s32 %s65, 1
      %s67 = scalar_select %p64, %s65, %s66
      %p70 = pneg %p64
      %p71 = scmp.eq.s32.totalorder %s15, 1
      %p72 = por %p70, %p71
      %p73 = scmp.ne.s32.totalorder %s65, %s68
      %p74 = scmp.eq.s32.totalorder %s15, 0
      %p75 = por %p73, %p74
      %p76 = scmp.ne.s32.totalorder %s65, %s68
      %p77 = scmp.eq.s32.totalorder %s20, 1
      %p78 = por %p76, %p77
      %p79 = scmp.ne.s32.totalorder %s68, %s69
      %p80 = scmp.eq.s32.totalorder %s20, 0
      %p81 = por %p79, %p80
      %p82 = scmp.ne.s32.totalorder %s68, %s69
      %p83 = scmp.eq.s32.totalorder %s21, 1
      %p84 = por %p82, %p83
      %p86 = scmp.ne.s32.totalorder %s69, %s85
      %p87 = scmp.eq.s32.totalorder %s21, 0
      %p88 = por %p86, %p87
      %s90 = sadd.s32 %s89, 1
      %p93 = scmp.eq.s32.totalorder %s15, 1
      %p94 = scmp.ne.s32.totalorder %s89, %s91
      %p95 = scmp.eq.s32.totalorder %s15, 0
      %p96 = por %p94, %p95
      %p97 = scmp.ne.s32.totalorder %s89, %s91
      %p98 = scmp.eq.s32.totalorder %s20, 1
      %p99 = por %p97, %p98
      %p100 = scmp.ne.s32.totalorder %s91, %s92
      %p101 = scmp.eq.s32.totalorder %s20, 0
      %p102 = por %p100, %p101
      %p103 = scmp.ne.s32.totalorder %s91, %s92
      %p104 = scmp.eq.s32.totalorder %s21, 1
      %p105 = por %p103, %p104
      %p107 = scmp.ne.s32.totalorder %s92, %s106
      %p108 = scmp.eq.s32.totalorder %s21, 0
      %p109 = por %p107, %p108
      %s110 = ssub.s32 %s23, %s30
      %s111 = ssub.s32 %s22, %s34
      %s112 = sor.u32 %s110, %s111
      %p113 = scmp.eq.s32.totalorder %s112, 0
      %s115 = sadd.s32 %s114, 1
      %s116 = scalar_select %p113, %s114, %s115
      %p119 = pneg %p113
      %p120 = scmp.eq.s32.totalorder %s15, 1
      %p121 = por %p119, %p120
      %p122 = scmp.ne.s32.totalorder %s114, %s117
      %p123 = scmp.eq.s32.totalorder %s15, 0
      %p124 = por %p122, %p123
      %p125 = scmp.ne.s32.totalorder %s114, %s117
      %p126 = scmp.eq.s32.totalorder %s20, 1
      %p127 = por %p125, %p126
      %p128 = scmp.ne.s32.totalorder %s117, %s118
      %p129 = scmp.eq.s32.totalorder %s20, 0
      %p130 = por %p128, %p129
      %p131 = scmp.ne.s32.totalorder %s117, %s118
      %p132 = scmp.eq.s32.totalorder %s21, 1
      %p133 = por %p131, %p132
      %p135 = scmp.ne.s32.totalorder %s118, %s134
      %p136 = scmp.eq.s32.totalorder %s21, 0
      %p137 = por %p135, %p136
      %p138 = scmp.le.s32.totalorder 1, %s15
      %p139 = scmp.lt.s32.totalorder %s15, 3
      %p140 = pnand %p138, %p139
      %p141 = pneg %p140
      // Predicated region
      $region9: #{tpu_custom_call.1} parent=5 // pred_check
        _
      $region10: #{tpu_custom_call.1} parent=5 // pred_check_branch
        %143 = sbr.rel (%p140) target = $region12
      $region11: #{tpu_custom_call.1} parent=5 // pred_region
        %s144 = ssub.s32 %s15, 1
        // Predicated region
        $region13: #{tpu_custom_call.1} parent=11 // pred_check
          %p145 = pneg %p81
        $region14: #{tpu_custom_call.1} parent=11 // pred_check_branch
          %147 = sbr.rel (%p145) target = $region16
        $region15: #{tpu_custom_call.1} parent=11 // pred_region
          %p148 = scmp.lt.s32.totalorder %s24, 0
          %s149 = scalar_select %p148, %s24, 0
          %s150 = smul.addr %s149, 2
          %s151 = scalar_lea.vmem %s1, %s150
        $region16: #{tpu_custom_call.1} parent=11 // pred_fallthru
          _
        // Predicated region
        $region17: #{tpu_custom_call.1} parent=11 // pred_check
          %p152 = pneg %p102
        $region18: #{tpu_custom_call.1} parent=11 // pred_check_branch
          %154 = sbr.rel (%p152) target = $region20
        $region19: #{tpu_custom_call.1} parent=11 // pred_region
          _
        $region20: #{tpu_custom_call.1} parent=11 // pred_fallthru
          _
      $region12: #{tpu_custom_call.1} parent=5 // pred_fallthru
        _
      %p155 = scmp.lt.s32.totalorder %s15, 2
      // Predicated region
      $region21: #{tpu_custom_call.1} parent=5 // pred_check
        %p156 = pneg %p155
      $region22: #{tpu_custom_call.1} parent=5 // pred_check_branch
        %158 = sbr.rel (%p156) target = $region24
      $region23: #{tpu_custom_call.1} parent=5 // pred_region
        // Predicated region
        $region25: #{tpu_custom_call.1} parent=23 // pred_check
          %p159 = pneg %p49
        $region26: #{tpu_custom_call.1} parent=23 // pred_check_branch
          %161 = sbr.rel (%p159) target = $region28
        $region27: #{tpu_custom_call.1} parent=23 // pred_region
          %s162 = sand.u32 %s39, 1
          %s163 = scalar_lea.sflag [#allocation3], %s162
          %s164 = sand.u32 %s39, 1
          %s165 = smul.addr %s164, 2
          %s166 = scalar_lea.vmem [#allocation2], %s165
          %s168 = ssub.s32 32, 32
          %169 = vsyncadd %s163, %s168
          %s170 = sadd.s32 %s22, %s23
          %s171 = smul.addr %s170, 32
          %s172 = scalar_lea.hbm %s0, %s171
          %s174 = sshll.u32 %s166, 4
          %s175 = int_to_ptr.vmem [resolvable:$true] %s174
          %177 = dma.hbm_to_vmem [thread:$0]  %s172, 32, %s175, %s163
        $region28: #{tpu_custom_call.1} parent=23 // pred_fallthru
          _
      $region24: #{tpu_custom_call.1} parent=5 // pred_fallthru
        _
      %p178 = scmp.le.s32.totalorder 1, %s15
      %p179 = scmp.lt.s32.totalorder %s15, 3
      %p180 = pnand %p178, %p179
      %p181 = pneg %p180
      // Predicated region
      $region29: #{tpu_custom_call.1} parent=5 // pred_check
        _
      $region30: #{tpu_custom_call.1} parent=5 // pred_check_branch
        %183 = sbr.rel (%p180) target = $region32
      $region31: #{tpu_custom_call.1} parent=5 // pred_region
        %s184 = ssub.s32 %s15, 1
        %s185 = sand.u32 %s42, 1
        %s186 = scalar_lea.sflag [#allocation3], %s185
        %s187 = sand.u32 %s42, 1
        %s188 = smul.addr %s187, 2
        %s189 = scalar_lea.vmem [#allocation2], %s188
        // Predicated region
        $region33: #{tpu_custom_call.1} parent=31 // pred_check
          %p190 = pneg %p55
        $region34: #{tpu_custom_call.1} parent=31 // pred_check_branch
          %192 = sbr.rel (%p190) target = $region36
        $region35: #{tpu_custom_call.1} parent=31 // pred_region
          %193 = dma.done %s186, 32
        $region36: #{tpu_custom_call.1} parent=31 // pred_fallthru
          _
        %s194 = sand.u32 %s42, 1
        %s195 = scalar_lea.sflag [#allocation3], %s194
        %s196 = sand.u32 %s42, 1
        %s197 = smul.addr %s196, 2
        %s198 = scalar_lea.vmem [#allocation2], %s197
        %p199 = pneg %p55
        %p200 = pneg %p52
        %p201 = scmp.lt.s32.totalorder %s24, 0
        %s202 = scalar_select %p201, %s24, 0
        %s203 = smul.addr %s202, 2
        %s204 = scalar_lea.vmem %s1, %s203
        %p205 = pneg %p81
        %p206 = pneg %p78
        %p207 = pneg %p102
        %p208 = pneg %p99
        %p209 = pneg %p130
        %p210 = pneg %p127
        %s211 = sand.u32 %s117, 1
        %s212 = scalar_lea.sflag [#allocation4], %s211
        %s213 = sand.u32 %s117, 1
        %s214 = smul.addr %s213, 2
        %s215 = scalar_lea.vmem [#allocation5], %s214
        %p216 = scmp.lt.s32.totalorder %s24, 0
        %s217 = scalar_select %p216, %s24, 0
        %s218 = smul.addr %s217, 2
        %s219 = scalar_lea.vmem %s1, %s218
        %v220 = vld [vmem:[%s2] sm:$0x1]
        %v221 = vld [vmem:[%s2 + $0x1] sm:$0x1]
        %v222 = vld [vmem:[%s2 + $0x2] sm:$0x1]
        %v223 = vld [vmem:[%s219] sm:$0x3]
        %225 = vset.pattern.permute.xlu0 0
        %226 = vperm.xlu0 %225, %v223
        %v227 = vpop.permute.xlu0 %226
        %v229 = vlaneseq
        %v230 = vshrl.u32 %v229, 7
        %v231 = vsub.s32 0, %v230
        %v232 = vrot.slane %v220, %v231
        %v233 = vadd.f32 %v227, %v232
        %v234 = vlaneseq
        %v235 = vshrl.u32 %v234, 7
        %v236 = vsub.s32 0, %v235
        %v237 = vrot.slane %v221, %v236
        %v238 = vmul.f32 %v233, %v237
        %vm239 = vcmp.gt.f32.partialorder %v222, 0.5
        %v240 = vand.u32 2147483647, %v238
        %vm241 = vcmp.le.f32.partialorder %v240, 0.7853982
        %vm242 = vcmp.lt.s32.totalorder %v238, 0
        %v243 = vand.u32 %v238, 2139095040
        %v244 = vshrl.u32 %v243, 23
        %v245 = vsub.s32 %v244, 127
        %v246 = vand.u32 2147483647, %v238
        %v247 = vand.u32 %v246, 8388607
        %v248 = vor.u32 %v247, 8388608
        %v249 = vsub.s32 0, %v248
        %v250 = vadd.s32 %v245, 1
        %vm251 = vcmp.gt.s32.totalorder %v250, 0
        %v252 = vsel %vm251, %v250, 0
        %v253 = vshrl.u32 %v252, 5
        %v254 = vand.u32 %v252, 31
        %v255 = vsub.s32 32, %v254
        %v256 = vshrl.u32 683565275, %v255
        %v257 = vshll.u32 683565275, %v254
        %v258 = vshrl.u32 2475754826, %v255
        %v259 = vor.u32 %v257, %v258
        %v260 = vshll.u32 2475754826, %v254
        %v261 = vshrl.u32 2131351028, %v255
        %v262 = vor.u32 %v260, %v261
        %v263 = vshll.u32 2131351028, %v254
        %v264 = vshrl.u32 2102212464, %v255
        %v265 = vor.u32 %v263, %v264
        %v266 = vshll.u32 2102212464, %v254
        %v267 = vshrl.u32 920167782, %v255
        %v268 = vor.u32 %v266, %v267
        %v269 = vshll.u32 920167782, %v254
        %v270 = vshrl.u32 1326507024, %v255
        %v271 = vor.u32 %v269, %v270
        %vm272 = vcmp.lt.s32.totalorder %v253, 1
        %vm273 = vcmp.lt.s32.totalorder %v253, 2
        %vm274 = vcmp.lt.s32.totalorder %v253, 3
        %vm275 = vcmp.lt.s32.totalorder %v253, 4
        %v276 = vsel %vm272, %v256, %v259
        %v277 = vsel %vm275, %v265, 2102212464
        %v278 = vsel %vm274, %v262, %v277
        %v279 = vsel %vm273, %v276, %v278
        %v280 = vsel %vm272, %v259, %v262
        %v281 = vsel %vm275, %v268, 920167782
        %v282 = vsel %vm274, %v265, %v281
        %v283 = vsel %vm273, %v280, %v282
        %v284 = vsel %vm272, %v262, %v265
        %v285 = vsel %vm275, %v271, 1326507024
        %v286 = vsel %vm274, %v268, %v285
        %v287 = vsel %vm273, %v284, %v286
        %v288 = vshll.u32 %v248, 8
        %v289 = vmul.u32.u64.compose %v288, %v287
        %v290 = vextract.low.u32 %v289
        %v291 = vextract.high.u32 %v289
        %v292 = vmul.u32.u64.compose %v288, %v283
        %v293 = vextract.low.u32 %v292
        %v294 = vextract.high.u32 %v292
        %v295 = vmul.u32 %v288, %v279
        %v296 = vadd.s32 %v291, %v293
        %vm297 = vc.u32 %v291, %v293
        %v298 = vadd.s32 %v294, 1
        %v299 = vsel %vm297, %v298, %v294
        %v300 = vadd.s32 %v295, %v299
        %v301 = vadd.s32 %v300, 536870912
        %v302 = vshrl.u32 %v301, 30
        %v303 = vshll.u32 %v302, 30
        %v304 = vsub.s32 %v300, %v303
        %vm305 = vcmp.lt.s32.totalorder %v304, 0
        %v306 = vsub.s32 0, %v304
        %v307 = vsel %vm305, %v306, %v304
        %v308 = vclz %v307
        %v309 = vsub.s32 %v308, 2
        %vm310 = vcmp.gt.s32.totalorder 0, %v309
        %v311 = vsel %vm310, 0, %v309
        %v312 = vsub.s32 32, %v311
        %v313 = vshll.u32 %v304, %v311
        %v314 = vshrl.u32 %v296, %v312
        %v315 = vor.u32 %v313, %v314
        %v316 = vsub.s32 4294967266, %v311
        %v317 = vadd.s32 %v316, 127
        %v318 = vshll.u32 %v317, 23
        %v319 = vor.u32 4788187, %v318
        %v320 = vand.u32 2147483647, %v319
        %v322 = vcvt.s32.f32 %v315
        %v323 = vmul.f32 %v322, %v320
        %v324 = vxor.u32 %v323, 2147483648
        %v325 = vsel %vm242, %v324, %v323
        %v326 = vsub.s32 4, %v302
        %v327 = vsel %vm242, %v326, %v302
        %v328 = vsel %vm241, %v238, %v325
        %v329 = vsel %vm241, 0, %v327
        %v330 = vcosq.f32.pop %v328
        %v331 = vsinq.f32.pop %v328
        %vm332 = vweird.f32 %v238
        %v333 = vand.u32 %v329, 3
        %vm334 = vcmp.lt.s32.totalorder %v333, 2
        %vm335 = vcmp.eq.s32.totalorder %v333, 0
        %v336 = vxor.u32 %v331, 2147483648
        %v337 = vsel %vm335, %v330, %v336
        %vm338 = vcmp.eq.s32.totalorder %v333, 2
        %v339 = vxor.u32 %v330, 2147483648
        %v340 = vsel %vm338, %v339, %v331
        %v341 = vsel %vm334, %v337, %v340
        %v342 = vsel %vm332, nan, %v341
        %v343 = vand.u32 2147483647, %v238
        %vm344 = vcmp.le.f32.partialorder %v343, 0.7853982
        %vm345 = vcmp.lt.s32.totalorder %v238, 0
        %v346 = vand.u32 %v238, 2139095040
        %v347 = vshrl.u32 %v346, 23
        %v348 = vsub.s32 %v347, 127
        %v349 = vand.u32 2147483647, %v238
        %v350 = vand.u32 %v349, 8388607
        %v351 = vor.u32 %v350, 8388608
        %v352 = vsub.s32 0, %v351
        %v353 = vadd.s32 %v348, 1
        %vm354 = vcmp.gt.s32.totalorder %v353, 0
        %v355 = vsel %vm354, %v353, 0
        %v356 = vshrl.u32 %v355, 5
        %v357 = vand.u32 %v355, 31
        %v358 = vsub.s32 32, %v357
        %v359 = vshrl.u32 683565275, %v358
        %v360 = vshll.u32 683565275, %v357
        %v361 = vshrl.u32 2475754826, %v358
        %v362 = vor.u32 %v360, %v361
        %v363 = vshll.u32 2475754826, %v357
        %v364 = vshrl.u32 2131351028, %v358
        %v365 = vor.u32 %v363, %v364
        %v366 = vshll.u32 2131351028, %v357
        %v367 = vshrl.u32 2102212464, %v358
        %v368 = vor.u32 %v366, %v367
        %v369 = vshll.u32 2102212464, %v357
        %v370 = vshrl.u32 920167782, %v358
        %v371 = vor.u32 %v369, %v370
        %v372 = vshll.u32 920167782, %v357
        %v373 = vshrl.u32 1326507024, %v358
        %v374 = vor.u32 %v372, %v373
        %vm375 = vcmp.lt.s32.totalorder %v356, 1
        %vm376 = vcmp.lt.s32.totalorder %v356, 2
        %vm377 = vcmp.lt.s32.totalorder %v356, 3
        %vm378 = vcmp.lt.s32.totalorder %v356, 4
        %v379 = vsel %vm375, %v359, %v362
        %v380 = vsel %vm378, %v368, 2102212464
        %v381 = vsel %vm377, %v365, %v380
        %v382 = vsel %vm376, %v379, %v381
        %v383 = vsel %vm375, %v362, %v365
        %v384 = vsel %vm378, %v371, 920167782
        %v385 = vsel %vm377, %v368, %v384
        %v386 = vsel %vm376, %v383, %v385
        %v387 = vsel %vm375, %v365, %v368
        %v388 = vsel %vm378, %v374, 1326507024
        %v389 = vsel %vm377, %v371, %v388
        %v390 = vsel %vm376, %v387, %v389
        %v391 = vshll.u32 %v351, 8
        %v392 = vmul.u32.u64.compose %v391, %v390
        %v393 = vextract.low.u32 %v392
        %v394 = vextract.high.u32 %v392
        %v395 = vmul.u32.u64.compose %v391, %v386
        %v396 = vextract.low.u32 %v395
        %v397 = vextract.high.u32 %v395
        %v398 = vmul.u32 %v391, %v382
        %v399 = vadd.s32 %v394, %v396
        %vm400 = vc.u32 %v394, %v396
        %v401 = vadd.s32 %v397, 1
        %v402 = vsel %vm400, %v401, %v397
        %v403 = vadd.s32 %v398, %v402
        %v404 = vadd.s32 %v403, 536870912
        %v405 = vshrl.u32 %v404, 30
        %v406 = vshll.u32 %v405, 30
        %v407 = vsub.s32 %v403, %v406
        %vm408 = vcmp.lt.s32.totalorder %v407, 0
        %v409 = vsub.s32 0, %v407
        %v410 = vsel %vm408, %v409, %v407
        %v411 = vclz %v410
        %v412 = vsub.s32 %v411, 2
        %vm413 = vcmp.gt.s32.totalorder 0, %v412
        %v414 = vsel %vm413, 0, %v412
        %v415 = vsub.s32 32, %v414
        %v416 = vshll.u32 %v407, %v414
        %v417 = vshrl.u32 %v399, %v415
        %v418 = vor.u32 %v416, %v417
        %v419 = vsub.s32 4294967266, %v414
        %v420 = vadd.s32 %v419, 127
        %v421 = vshll.u32 %v420, 23
        %v422 = vor.u32 4788187, %v421
        %v423 = vand.u32 2147483647, %v422
        %v425 = vcvt.s32.f32 %v418
        %v426 = vmul.f32 %v425, %v423
        %v427 = vxor.u32 %v426, 2147483648
        %v428 = vsel %vm345, %v427, %v426
        %v429 = vsub.s32 4, %v405
        %v430 = vsel %vm345, %v429, %v405
        %v431 = vsel %vm344, %v238, %v428
        %v432 = vsel %vm344, 0, %v430
        %v433 = vcosq.f32.pop %v431
        %v434 = vsinq.f32.pop %v431
        %vm435 = vweird.f32 %v238
        %v436 = vadd.s32 %v432, 3
        %v437 = vand.u32 %v436, 3
        %vm438 = vcmp.lt.s32.totalorder %v437, 2
        %vm439 = vcmp.eq.s32.totalorder %v437, 0
        %v440 = vxor.u32 %v434, 2147483648
        %v441 = vsel %vm439, %v433, %v440
        %vm442 = vcmp.eq.s32.totalorder %v437, 2
        %v443 = vxor.u32 %v433, 2147483648
        %v444 = vsel %vm442, %v443, %v434
        %v445 = vsel %vm438, %v441, %v444
        %v446 = vsel %vm435, nan, %v445
        %v447 = vsel %vm239, 1, 0
        %v448 = vlaneseq
        %v449 = vshrl.u32 %v448, 7
        %v450 = vsub.s32 0, %v449
        %v451 = vrot.slane %v447, %v450
        %vm452 = vcmp.eq.s32.totalorder %v451, 1
        %v453 = vsel %vm452, %v342, %v446
        %v454 = vld [vmem:[%s189] sm:$0x3]
        %v455 = vadd.f32 %v454, %v453
        %456 = vst [vmem:[%s215] sm:$0x3] %v455
        %s457 = sand.u32 %s117, 1
        %s458 = scalar_lea.sflag [#allocation4], %s457
        %s459 = sand.u32 %s117, 1
        %s460 = smul.addr %s459, 2
        %s461 = scalar_lea.vmem [#allocation5], %s460
        // Predicated region
        $region37: #{tpu_custom_call.1} parent=31 // pred_check
          %p462 = pneg %p127
        $region38: #{tpu_custom_call.1} parent=31 // pred_check_branch
          %464 = sbr.rel (%p462) target = $region40
        $region39: #{tpu_custom_call.1} parent=31 // pred_region
          %s466 = ssub.s32 32, 32
          %467 = vsyncadd %s458, %s466
          %s468 = sadd.s32 %s24, %s25
          %s469 = smul.addr %s468, 32
          %s470 = scalar_lea.hbm %s3, %s469
          %s472 = sshll.u32 %s461, 4
          %s473 = int_to_ptr.vmem [resolvable:$true] %s472
          %475 = dma.vmem_to_hbm [thread:$0]  %s473, 32, %s470, %s458
        $region40: #{tpu_custom_call.1} parent=31 // pred_fallthru
          _
      $region32: #{tpu_custom_call.1} parent=5 // pred_fallthru
        _
      %p476 = scmp.le.s32.totalorder 2, %s15
      // Predicated region
      $region41: #{tpu_custom_call.1} parent=5 // pred_check
        %p477 = pneg %p476
      $region42: #{tpu_custom_call.1} parent=5 // pred_check_branch
        %479 = sbr.rel (%p477) target = $region44
      $region43: #{tpu_custom_call.1} parent=5 // pred_region
        %s480 = ssub.s32 %s15, 2
        // Predicated region
        $region45: #{tpu_custom_call.1} parent=43 // pred_check
          %p481 = pneg %p133
        $region46: #{tpu_custom_call.1} parent=43 // pred_check_branch
          %483 = sbr.rel (%p481) target = $region48
        $region47: #{tpu_custom_call.1} parent=43 // pred_region
          %s484 = sand.u32 %s118, 1
          %s485 = scalar_lea.sflag [#allocation4], %s484
          %s486 = sand.u32 %s118, 1
          %s487 = smul.addr %s486, 2
          %s488 = scalar_lea.vmem [#allocation5], %s487
          %489 = dma.done %s485, 32
        $region48: #{tpu_custom_call.1} parent=43 // pred_fallthru
          _
      $region44: #{tpu_custom_call.1} parent=5 // pred_fallthru
        _
    $region6: #{tpu_custom_call.1} parent=1 // loop_footer
      %s19 = sadd.s32 1, %s15
    $region7: #{tpu_custom_call.1} parent=1 // loop_footer_branch
      %14 = sbr.rel target = $region3
    $region8: #{tpu_custom_call.1} parent=1 // loop_exit
      _
    %490 = vsyncpa [#allocation3], 1
    %s491 = scalar_lea.sflag [#allocation3], 1
    %492 = vsyncpa %s491, 1
    %493 = vsyncpa [#allocation4], 1
    %s494 = scalar_lea.sflag [#allocation4], 1
    %495 = vsyncpa %s494, 1

</llo_original>
